<compile_context>
chip_gen: v5e
topology: v5e:2x2
jax: 0.10.0
libtpu: 0.0.40
codegen_flags: <defaults>
</compile_context>

<pallas_src>
import jax
import jax.numpy as jnp
from jax.experimental import pallas as pl
from jax.experimental.pallas import tpu as pltpu

LANE = 128
SUBLANE = 8
_SMALL_PROBLEM_ELEMS = 4096   # below this, XLA's fused gemm beats pallas fixed cost
_MAX_BLOCK_S = 512            # seq-tile cap (near the measured HBM-roofline sweet spot)
_MIN_GRID_TILES = 4           # >=4 tiles: megacore sharding (v7x) + DMA/compute overlap


def _round_up(x, m):
    return ((x + m - 1) // m) * m


# ----------------------------- Pallas kernel ------------------------------ #
def _linear_kernel(x_ref, w_ref, b_ref, o_ref):
    # x_ref: (bs, Din) f32 | w_ref: (Din, Dpad) bf16 | b_ref: (1, Dout) f32
    # o_ref: (bs, Dout) f32
    dout = o_ref.shape[-1]
    x_bf = x_ref[...].astype(jnp.bfloat16)            # cheap VPU pack -> MXU bf16 path
    acc = jnp.dot(x_bf, w_ref[...], preferred_element_type=jnp.float32)  # (bs, Dpad) f32
    # Slice the accumulator to the true output width and fuse the bias add,
    # so the store (and HBM writeback) is only dout columns wide.
    o_ref[...] = (acc[:, :dout] + b_ref[...]).astype(o_ref.dtype)


def _pick_block_s(s):
    """Seq tile: multiple of 8, capped, sized so the grid has >= _MIN_GRID_TILES steps."""
    bs = _round_up(pl.cdiv(s, _MIN_GRID_TILES), SUBLANE)
    return max(SUBLANE, min(_MAX_BLOCK_S, bs))


def pallas_linear(x, w_packed, b_row, dout):
    """y = x @ w_packed (bf16, lane-padded) + b_row, written at true width dout."""
    S, Din = x.shape
    Dpad = w_packed.shape[1]
    bs = _pick_block_s(S)
    grid = (pl.cdiv(S, bs),)   # ragged tail handled by Pallas block masking

    return pl.pallas_call(
        _linear_kernel,
        out_shape=jax.ShapeDtypeStruct((S, dout), jnp.float32),
        grid_spec=pl.GridSpec(
            grid=grid,
            in_specs=[
                pl.BlockSpec((bs, Din), lambda i: (i, 0)),     # seq tile (pipelined)
                pl.BlockSpec((Din, Dpad), lambda i: (0, 0)),   # resident bf16 weight
                pl.BlockSpec((1, dout), lambda i: (0, 0)),     # resident bias
            ],
            out_specs=pl.BlockSpec((bs, dout), lambda i: (i, 0)),
        ),
        compiler_params=pltpu.CompilerParams(
            dimension_semantics=("parallel",),     # v7x: shard seq tiles across both TCs
            vmem_limit_bytes=32 * 1024 * 1024,     # explicit budget, safe on v5e/v6e/v7x
        ),
    )(x, w_packed, b_row)


# ------------------------- Wrapped "inner" module ------------------------- #
class Linear:
    """Deterministic Linear(din, dout); large inputs run the Pallas kernel."""

    def __init__(self, din, dout, key):
        kw, kb = jax.random.split(key)
        # nn.Linear layout for reference: weight [dout, din], bias [dout]
        self.weight = jax.random.normal(kw, (dout, din), jnp.float32) * 0.02
        self.bias = jax.random.normal(kb, (dout,), jnp.float32) * 0.02
        self.din, self.dout = din, dout

        # One-time packing: transpose to [din, dout], pad dout -> multiple of 128
        # (lane-dense MXU output), cast weight to bf16.  Bias stays f32, unpadded.
        dpad = _round_up(dout, LANE)
        w_pad = jnp.zeros((din, dpad), jnp.float32).at[:, :dout].set(self.weight.T)
        self._w_packed = w_pad.astype(jnp.bfloat16)
        self._b_row = self.bias.reshape(1, dout)

    def __call__(self, x):
        S, Din = x.shape
        if S * Din < _SMALL_PROBLEM_ELEMS:
            # Tiny problem: pallas_call fixed cost (grid setup, DMA descriptors,
            # launch) dominates -- plain XLA gemm is strictly faster here.
            return x @ self.weight.T + self.bias
        return pallas_linear(x, self._w_packed, self._b_row, self.dout)


# ----------------------------- DummyScope port ----------------------------- #
class DummyScope:
    """Used for keeping scope the same between pretrain and interactive training.

    Faithful port: builds a nested attribute chain named by `scope_list`;
    forward just delegates through the first scope name. No compute of its own.
    """

    def __init__(self, module, scope_list):
        assert isinstance(scope_list, list) and len(scope_list) > 0
        self.scope_list = scope_list
        if len(scope_list) > 1:
            setattr(self, scope_list[0], DummyScope(module, scope_list[1:]))
        elif len(scope_list) == 1:
            setattr(self, scope_list[0], module)

    def __call__(self, *inputs, **kwargs):
        return getattr(self, self.scope_list[0])(*inputs, **kwargs)


# ---------------------------------- main ----------------------------------- #
if __name__ == "__main__":
    key = jax.random.PRNGKey(0)
    k_small, k_large, k_mod = jax.random.split(key, 3)

    hidden = 32
    inner = Linear(hidden, hidden, k_mod)
    scoped = DummyScope(inner, ["backbone", "encoder", "fc"])

    # (1) Larger seq exercises the Pallas kernel path (4 seq tiles of 256).
    seq_big = 1024
    x_big = jax.random.normal(k_large, (seq_big, hidden), jnp.float32)
    y_big = jax.block_until_ready(scoped(x_big))
    ref_big = x_big @ inner.weight.T + inner.bias
    assert y_big.shape == (seq_big, hidden)
    # bf16 MXU inputs with f32 accumulation -> loosened tolerance
    assert jnp.max(jnp.abs(y_big - ref_big)) < 2e-2

    # (2) Module-consistent tiny input (8 x 32) goes through the XLA short-circuit.
    seq_small = 8
    x_small = jax.random.normal(k_small, (seq_small, hidden), jnp.float32)
    y_small = jax.block_until_ready(scoped(x_small))
    ref_small = x_small @ inner.weight.T + inner.bias
    assert y_small.shape == (seq_small, hidden)
    assert jnp.max(jnp.abs(y_small - ref_small)) < 1e-4

    print("KERNEL_OK")
</pallas_src>

<mosaic_0001>
module attributes {stable_mosaic.version = 11 : i64} {
  func.func @_linear_kernel(%arg0: i32, %arg1: memref<256x32xf32, #tpu.memory_space<vmem>>, %arg2: memref<32x128xbf16, #tpu.memory_space<vmem>>, %arg3: memref<1x32xf32, #tpu.memory_space<vmem>>, %arg4: memref<256x32xf32, #tpu.memory_space<vmem>>) attributes {dimension_semantics = [#tpu.dimension_semantics<parallel>], iteration_bounds = array<i64: 4>, scalar_prefetch = 0 : i64, scratch_operands = 0 : i64, tpu.core_type = #tpu.core_type<tc>, window_params = [{transform_indices = @transform_0, window_bounds = array<i64: 256, 32>}, {pipeline_mode = #tpu.pipeline_mode<synchronous>, transform_indices = @transform_1, window_bounds = array<i64: 32, 128>}, {pipeline_mode = #tpu.pipeline_mode<synchronous>, transform_indices = @transform_2, window_bounds = array<i64: 1, 32>}, {transform_indices = @transform_3, window_bounds = array<i64: 256, 32>}]} {
    %c0 = arith.constant 0 : index
    %c0_0 = arith.constant 0 : index
    %0 = vector.load %arg1[%c0, %c0_0] : memref<256x32xf32, #tpu.memory_space<vmem>>, vector<256x32xf32>
    %1 = arith.truncf %0 : vector<256x32xf32> to vector<256x32xbf16>
    %c0_1 = arith.constant 0 : index
    %c0_2 = arith.constant 0 : index
    %2 = vector.load %arg2[%c0_1, %c0_2] : memref<32x128xbf16, #tpu.memory_space<vmem>>, vector<32x128xbf16>
    %cst = arith.constant dense<0.000000e+00> : vector<256x128xf32>
    %3 = tpu.matmul %1, %2, %cst {dimension_numbers = #tpu.dot_dimension_numbers<[1], [0], [0], [1], [0, 0, 1, 1], [], []>} : vector<256x32xbf16>, vector<32x128xbf16>, vector<256x128xf32> -> vector<256x128xf32>
    %4 = vector.extract_strided_slice %3 {offsets = [0, 0], sizes = [256, 32], strides = [1, 1]} : vector<256x128xf32> to vector<256x32xf32>
    %c0_3 = arith.constant 0 : index
    %c0_4 = arith.constant 0 : index
    %5 = vector.load %arg3[%c0_3, %c0_4] : memref<1x32xf32, #tpu.memory_space<vmem>>, vector<1x32xf32>
    %6 = vector.broadcast %5 : vector<1x32xf32> to vector<256x32xf32>
    %7 = arith.addf %4, %6 : vector<256x32xf32>
    %c0_5 = arith.constant 0 : index
    %c0_6 = arith.constant 0 : index
    %8 = vector.load %arg4[%c0_5, %c0_6] : memref<256x32xf32, #tpu.memory_space<vmem>>, vector<256x32xf32>
    tpu.vector_store %arg4[%c0_5, %c0_6], %7 {strides = array<i32>} : memref<256x32xf32, #tpu.memory_space<vmem>>, vector<256x32xf32>,
    return
  }
  func.func @transform_0(%arg0: i32) -> (i32, i32) {
    %c0_i32 = arith.constant 0 : i32
    %c0_i32_0 = arith.constant 0 : i32
    return %arg0, %c0_i32 : i32, i32
  }
  func.func @transform_1(%arg0: i32) -> (i32, i32) {
    %c0_i32 = arith.constant 0 : i32
    %c0_i32_0 = arith.constant 0 : i32
    %c0_i32_1 = arith.constant 0 : i32
    return %c0_i32, %c0_i32_0 : i32, i32
  }
  func.func @transform_2(%arg0: i32) -> (i32, i32) {
    %c0_i32 = arith.constant 0 : i32
    %c0_i32_0 = arith.constant 0 : i32
    %c0_i32_1 = arith.constant 0 : i32
    return %c0_i32, %c0_i32_0 : i32, i32
  }
  func.func @transform_3(%arg0: i32) -> (i32, i32) {
    %c0_i32 = arith.constant 0 : i32
    %c0_i32_0 = arith.constant 0 : i32
    return %arg0, %c0_i32 : i32, i32
  }
}

</mosaic_0001>

<llo_original>
// kernel: tpu_custom_call.1
$region0: #{tpu_custom_call.1}
  #allocation0 [shape = 'u32[]', space=smem, size = 0x4, offset = 0x4, fixed_abs, tag = 'smem constant byte address 0x4 - core index']
  #allocation1 [shape = 'u32[72,128]{1,0:T(1,128)}', space=vmem, size = 0x9000, scoped, tag = 'internal scratch']
  %s0 = inlined_call_operand.vmem [shape: f32[1024,32], index: 0, kind: input, shape index: {}]
  %s1 = inlined_call_operand.vmem [shape: bf16[32,128], index: 1, kind: input, shape index: {}]
  %s2 = inlined_call_operand.vmem [shape: f32[1,32], index: 2, kind: input, shape index: {}]
  %s3 = inlined_call_operand.vmem [shape: f32[1024,32], index: 3, kind: output, shape index: {}]
  %s4 = sld [smem:[#allocation0]]
  $region45: #{tpu_custom_call.1} parent=0
    _
  %s6 = ssub.s32 1, %s4
  %s7 = scalar_select 0, %s6, %s4
  loop: start=0, step=1, limit=6
  $region2: #{tpu_custom_call.1} parent=0 // loop_pre_header
    _
  $region3: #{tpu_custom_call.1} parent=0 // loop_header
    %s9 = sphi 0, %s13
    %p10 = scmp.ge.s32.totalorder %s9, 6
    %s19 = sphi 0, %s21
    %s22 = sphi 0, %s19
    %s23 = sphi 0, %s22
    %s39 = sphi 0, %s23
    %s43 = sphi 0, %s43
    %s45 = sphi 0, %s43
    %s46 = sphi 0, %s45
    %s60 = sphi 0, %s46
    %s64 = sphi 0, %s64
    %s66 = sphi 0, %s64
    %s67 = sphi 0, %s66
    %s81 = sphi 0, %s67
    %s87 = sphi 0, %s89
    %s90 = sphi 0, %s87
    %s91 = sphi 0, %s90
    %s107 = sphi 0, %s91
  $region4: #{tpu_custom_call.1} parent=0 // loop_header_branch
    %12 = sbr.rel (%p10) target = $region8
  $region5: #{tpu_custom_call.1} parent=0 // loop_body
    %s14 = ssub.s32 %s9, 1
    %s15 = ssub.s32 %s9, 2
    %s16 = sadd.s32 %s9, 1
    %s17 = ssub.s32 %s9, %s16
    %p18 = scmp.eq.s32.totalorder %s17, 0
    %s20 = sadd.s32 %s19, 1
    %s21 = scalar_select %p18, %s19, %s20
    %p24 = pneg %p18
    %p25 = scmp.eq.s32.totalorder %s9, 3
    %p26 = por %p24, %p25
    %p27 = scmp.ne.s32.totalorder %s19, %s22
    %p28 = scmp.eq.s32.totalorder %s9, 0
    %p29 = por %p27, %p28
    %p30 = scmp.ne.s32.totalorder %s19, %s22
    %p31 = scmp.eq.s32.totalorder %s14, 3
    %p32 = por %p30, %p31
    %p33 = scmp.ne.s32.totalorder %s22, %s23
    %p34 = scmp.eq.s32.totalorder %s14, 0
    %p35 = por %p33, %p34
    %p36 = scmp.ne.s32.totalorder %s22, %s23
    %p37 = scmp.eq.s32.totalorder %s15, 3
    %p38 = por %p36, %p37
    %p40 = scmp.ne.s32.totalorder %s23, %s39
    %p41 = scmp.eq.s32.totalorder %s15, 0
    %p42 = por %p40, %p41
    %s44 = sadd.s32 %s43, 1
    %p47 = scmp.eq.s32.totalorder %s9, 3
    %p48 = scmp.ne.s32.totalorder %s43, %s45
    %p49 = scmp.eq.s32.totalorder %s9, 0
    %p50 = por %p48, %p49
    %p51 = scmp.ne.s32.totalorder %s43, %s45
    %p52 = scmp.eq.s32.totalorder %s14, 3
    %p53 = por %p51, %p52
    %p54 = scmp.ne.s32.totalorder %s45, %s46
    %p55 = scmp.eq.s32.totalorder %s14, 0
    %p56 = por %p54, %p55
    %p57 = scmp.ne.s32.totalorder %s45, %s46
    %p58 = scmp.eq.s32.totalorder %s15, 3
    %p59 = por %p57, %p58
    %p61 = scmp.ne.s32.totalorder %s46, %s60
    %p62 = scmp.eq.s32.totalorder %s15, 0
    %p63 = por %p61, %p62
    %s65 = sadd.s32 %s64, 1
    %p68 = scmp.eq.s32.totalorder %s9, 3
    %p69 = scmp.ne.s32.totalorder %s64, %s66
    %p70 = scmp.eq.s32.totalorder %s9, 0
    %p71 = por %p69, %p70
    %p72 = scmp.ne.s32.totalorder %s64, %s66
    %p73 = scmp.eq.s32.totalorder %s14, 3
    %p74 = por %p72, %p73
    %p75 = scmp.ne.s32.totalorder %s66, %s67
    %p76 = scmp.eq.s32.totalorder %s14, 0
    %p77 = por %p75, %p76
    %p78 = scmp.ne.s32.totalorder %s66, %s67
    %p79 = scmp.eq.s32.totalorder %s15, 3
    %p80 = por %p78, %p79
    %p82 = scmp.ne.s32.totalorder %s67, %s81
    %p83 = scmp.eq.s32.totalorder %s15, 0
    %p84 = por %p82, %p83
    %s85 = ssub.s32 %s9, %s16
    %p86 = scmp.eq.s32.totalorder %s85, 0
    %s88 = sadd.s32 %s87, 1
    %s89 = scalar_select %p86, %s87, %s88
    %p92 = pneg %p86
    %p93 = scmp.eq.s32.totalorder %s9, 3
    %p94 = por %p92, %p93
    %p95 = scmp.ne.s32.totalorder %s87, %s90
    %p96 = scmp.eq.s32.totalorder %s9, 0
    %p97 = por %p95, %p96
    %p98 = scmp.ne.s32.totalorder %s87, %s90
    %p99 = scmp.eq.s32.totalorder %s14, 3
    %p100 = por %p98, %p99
    %p101 = scmp.ne.s32.totalorder %s90, %s91
    %p102 = scmp.eq.s32.totalorder %s14, 0
    %p103 = por %p101, %p102
    %p104 = scmp.ne.s32.totalorder %s90, %s91
    %p105 = scmp.eq.s32.totalorder %s15, 3
    %p106 = por %p104, %p105
    %p108 = scmp.ne.s32.totalorder %s91, %s107
    %p109 = scmp.eq.s32.totalorder %s15, 0
    %p110 = por %p108, %p109
    %p111 = scmp.le.s32.totalorder 1, %s9
    %p112 = scmp.lt.s32.totalorder %s9, 5
    %p113 = pnand %p111, %p112
    %p114 = pneg %p113
    // Predicated region
    $region9: #{tpu_custom_call.1} parent=5 // pred_check
      _
    $region10: #{tpu_custom_call.1} parent=5 // pred_check_branch
      %116 = sbr.rel (%p113) target = $region12
    $region11: #{tpu_custom_call.1} parent=5 // pred_region
      %s117 = ssub.s32 %s9, 1
      // Predicated region
      $region13: #{tpu_custom_call.1} parent=11 // pred_check
        %p118 = pneg %p56
      $region14: #{tpu_custom_call.1} parent=11 // pred_check_branch
        %120 = sbr.rel (%p118) target = $region16
      $region15: #{tpu_custom_call.1} parent=11 // pred_region
        _
      $region16: #{tpu_custom_call.1} parent=11 // pred_fallthru
        _
      // Predicated region
      $region17: #{tpu_custom_call.1} parent=11 // pred_check
        %p121 = pneg %p77
      $region18: #{tpu_custom_call.1} parent=11 // pred_check_branch
        %123 = sbr.rel (%p121) target = $region20
      $region19: #{tpu_custom_call.1} parent=11 // pred_region
        _
      $region20: #{tpu_custom_call.1} parent=11 // pred_fallthru
        _
    $region12: #{tpu_custom_call.1} parent=5 // pred_fallthru
      _
    %p124 = scmp.lt.s32.totalorder %s9, 4
    // Predicated region
    $region21: #{tpu_custom_call.1} parent=5 // pred_check
      %p125 = pneg %p124
    $region22: #{tpu_custom_call.1} parent=5 // pred_check_branch
      %127 = sbr.rel (%p125) target = $region24
    $region23: #{tpu_custom_call.1} parent=5 // pred_region
      // Predicated region
      $region25: #{tpu_custom_call.1} parent=23 // pred_check
        %p128 = pneg %p29
      $region26: #{tpu_custom_call.1} parent=23 // pred_check_branch
        %130 = sbr.rel (%p128) target = $region28
      $region27: #{tpu_custom_call.1} parent=23 // pred_region
        %s131 = smul.u32 32, %s9
        %p132 = scmp.lt.s32.totalorder %s131, 127
        %s133 = scalar_select %p132, %s131, 127
        %s134 = smul.addr %s133, 8
        %s135 = scalar_lea.vmem %s0, %s134
        %s136 = smul.u32 32, %s9
      $region28: #{tpu_custom_call.1} parent=23 // pred_fallthru
        _
    $region24: #{tpu_custom_call.1} parent=5 // pred_fallthru
      _
    %p137 = scmp.le.s32.totalorder 1, %s9
    %p138 = scmp.lt.s32.totalorder %s9, 5
    %p139 = pnand %p137, %p138
    %p140 = pneg %p139
    // Predicated region
    $region29: #{tpu_custom_call.1} parent=5 // pred_check
      _
    $region30: #{tpu_custom_call.1} parent=5 // pred_check_branch
      %142 = sbr.rel (%p139) target = $region32
    $region31: #{tpu_custom_call.1} parent=5 // pred_region
      %s143 = ssub.s32 %s9, 1
      %s144 = smul.u32 32, %s14
      %p145 = scmp.lt.s32.totalorder %s144, 127
      %s146 = scalar_select %p145, %s144, 127
      %s147 = smul.addr %s146, 8
      %s148 = scalar_lea.vmem %s0, %s147
      %p149 = pneg %p35
      %p150 = pneg %p32
      %p151 = pneg %p56
      %p152 = pneg %p53
      %p153 = pneg %p77
      %p154 = pneg %p74
      %p155 = pneg %p103
      %p156 = pneg %p100
      %s157 = smul.u32 32, %s14
      %p158 = scmp.lt.s32.totalorder %s157, 127
      %s159 = scalar_select %p158, %s157, 127
      %s160 = smul.addr %s159, 8
      %s161 = scalar_lea.vmem %s3, %s160
      %s162 = smul.u32 32, %s14
      %p163 = scmp.lt.s32.totalorder %s162, 127
      %s164 = scalar_select %p163, %s162, 127
      %s165 = smul.addr %s164, 8
      %s166 = scalar_lea.vmem %s0, %s165
      %s167 = smul.u32 32, %s14
      %s168 = smul.u32 32, %s14
      %p169 = scmp.lt.s32.totalorder %s168, 127
      %s170 = scalar_select %p169, %s168, 127
      %s171 = smul.addr %s170, 8
      %s172 = scalar_lea.vmem %s3, %s171
      %s173 = smul.u32 32, %s14
      %v175 = vld [vmem:[%s166] sm:$0xff]
      %v176 = vld [vmem:[%s166 + $0x8] sm:$0xff]
      %v177 = vld [vmem:[%s166 + $0x10] sm:$0xff]
      %v178 = vld [vmem:[%s166 + $0x18] sm:$0xff]
      %v179 = vld [vmem:[%s166 + $0x20] sm:$0xff]
      %v180 = vld [vmem:[%s166 + $0x28] sm:$0xff]
      %v181 = vld [vmem:[%s166 + $0x30] sm:$0xff]
      %v182 = vld [vmem:[%s166 + $0x38] sm:$0xff]
      %v183 = vld [vmem:[%s166 + $0x40] sm:$0xff]
      %v184 = vld [vmem:[%s166 + $0x48] sm:$0xff]
      %v185 = vld [vmem:[%s166 + $0x50] sm:$0xff]
      %v186 = vld [vmem:[%s166 + $0x58] sm:$0xff]
      %v187 = vld [vmem:[%s166 + $0x60] sm:$0xff]
      %v188 = vld [vmem:[%s166 + $0x68] sm:$0xff]
      %v189 = vld [vmem:[%s166 + $0x70] sm:$0xff]
      %v190 = vld [vmem:[%s166 + $0x78] sm:$0xff]
      %v191 = vld [vmem:[%s166 + $0x80] sm:$0xff]
      %v192 = vld [vmem:[%s166 + $0x88] sm:$0xff]
      %v193 = vld [vmem:[%s166 + $0x90] sm:$0xff]
      %v194 = vld [vmem:[%s166 + $0x98] sm:$0xff]
      %v195 = vld [vmem:[%s166 + $0xa0] sm:$0xff]
      %v196 = vld [vmem:[%s166 + $0xa8] sm:$0xff]
      %v197 = vld [vmem:[%s166 + $0xb0] sm:$0xff]
      %v198 = vld [vmem:[%s166 + $0xb8] sm:$0xff]
      %v199 = vld [vmem:[%s166 + $0xc0] sm:$0xff]
      %v200 = vld [vmem:[%s166 + $0xc8] sm:$0xff]
      %v201 = vld [vmem:[%s166 + $0xd0] sm:$0xff]
      %v202 = vld [vmem:[%s166 + $0xd8] sm:$0xff]
      %v203 = vld [vmem:[%s166 + $0xe0] sm:$0xff]
      %v204 = vld [vmem:[%s166 + $0xe8] sm:$0xff]
      %v205 = vld [vmem:[%s166 + $0xf0] sm:$0xff]
      %v206 = vld [vmem:[%s166 + $0xf8] sm:$0xff]
      %v207 = vpack.c.bf16 %v176, %v175
      %v208 = vpack.c.bf16 %v178, %v177
      %v209 = vpack.c.bf16 %v180, %v179
      %v210 = vpack.c.bf16 %v182, %v181
      %v211 = vpack.c.bf16 %v184, %v183
      %v212 = vpack.c.bf16 %v186, %v185
      %v213 = vpack.c.bf16 %v188, %v187
      %v214 = vpack.c.bf16 %v190, %v189
      %v215 = vpack.c.bf16 %v192, %v191
      %v216 = vpack.c.bf16 %v194, %v193
      %v217 = vpack.c.bf16 %v196, %v195
      %v218 = vpack.c.bf16 %v198, %v197
      %v219 = vpack.c.bf16 %v200, %v199
      %v220 = vpack.c.bf16 %v202, %v201
      %v221 = vpack.c.bf16 %v204, %v203
      %v222 = vpack.c.bf16 %v206, %v205
      %v223 = vld [vmem:[%s1] sm:$0xf]
      %v224 = vld [vmem:[%s1 + $0x4] sm:$0xf]
      %v225 = vld [vmem:[%s1 + $0x8] sm:$0xf]
      %v226 = vld [vmem:[%s1 + $0xc] sm:$0xf]
      %v231 = vunpack.c.l.b16 %v223
      %v232 = vunpack.c.l.b16 %v224
      %v233 = vunpack.c.l.b16 %v225
      %v234 = vunpack.c.l.b16 %v226
      %v235 = vpack.c.b16 %v232, %v231
      %v236 = vpack.c.b16 %v234, %v233
      %vm239 = vcmask 261120
      %v241 = vsel %vm239, %v207, 0
      %v244 = vsel %vm239, %v208, 0
      %v247 = vsel %vm239, %v209, 0
      %v250 = vsel %vm239, %v210, 0
      %v253 = vsel %vm239, %v211, 0
      %v256 = vsel %vm239, %v212, 0
      %v259 = vsel %vm239, %v213, 0
      %v262 = vsel %vm239, %v214, 0
      %v265 = vsel %vm239, %v215, 0
      %v268 = vsel %vm239, %v216, 0
      %v271 = vsel %vm239, %v217, 0
      %v274 = vsel %vm239, %v218, 0
      %v277 = vsel %vm239, %v219, 0
      %v280 = vsel %vm239, %v220, 0
      %v283 = vsel %vm239, %v221, 0
      %v286 = vsel %vm239, %v222, 0
      %288 = vmatpush.bf16.msra.mxu0 0
      %289 = vmatpush.bf16.msra.mxu0 0
      %290 = vmatpush.bf16.msra.mxu0 0
      %291 = vmatpush.bf16.msra.mxu0 0
      %292 = vmatpush.bf16.msra.mxu0 0
      %293 = vmatpush.bf16.msra.mxu0 0
      %294 = vmatpush.bf16.msra.mxu0 %v236
      %295 = vmatpush.bf16.msra.mxu0 %v235
      %296 = vmatmul.bf16.gmra.mxu0 %v241
      %v297 = vpop.f32.mrf.mxu0
      %v298 = vadd.f32 0.0, %v297
      %v299 = vpop.f32.mrf.mxu0
      %v300 = vadd.f32 0.0, %v299
      %301 = vmatmul.bf16.gmra.mxu0 %v244
      %v302 = vpop.f32.mrf.mxu0
      %v303 = vadd.f32 0.0, %v302
      %v304 = vpop.f32.mrf.mxu0
      %v305 = vadd.f32 0.0, %v304
      %306 = vmatmul.bf16.gmra.mxu0 %v247
      %v307 = vpop.f32.mrf.mxu0
      %v308 = vadd.f32 0.0, %v307
      %v309 = vpop.f32.mrf.mxu0
      %v310 = vadd.f32 0.0, %v309
      %311 = vmatmul.bf16.gmra.mxu0 %v250
      %v312 = vpop.f32.mrf.mxu0
      %v313 = vadd.f32 0.0, %v312
      %v314 = vpop.f32.mrf.mxu0
      %v315 = vadd.f32 0.0, %v314
      %316 = vmatmul.bf16.gmra.mxu0 %v253
      %v317 = vpop.f32.mrf.mxu0
      %v318 = vadd.f32 0.0, %v317
      %v319 = vpop.f32.mrf.mxu0
      %v320 = vadd.f32 0.0, %v319
      %321 = vmatmul.bf16.gmra.mxu0 %v256
      %v322 = vpop.f32.mrf.mxu0
      %v323 = vadd.f32 0.0, %v322
      %v324 = vpop.f32.mrf.mxu0
      %v325 = vadd.f32 0.0, %v324
      %326 = vmatmul.bf16.gmra.mxu0 %v259
      %v327 = vpop.f32.mrf.mxu0
      %v328 = vadd.f32 0.0, %v327
      %v329 = vpop.f32.mrf.mxu0
      %v330 = vadd.f32 0.0, %v329
      %331 = vmatmul.bf16.gmra.mxu0 %v262
      %v332 = vpop.f32.mrf.mxu0
      %v333 = vadd.f32 0.0, %v332
      %v334 = vpop.f32.mrf.mxu0
      %v335 = vadd.f32 0.0, %v334
      %336 = vmatmul.bf16.gmra.mxu0 %v265
      %v337 = vpop.f32.mrf.mxu0
      %v338 = vadd.f32 0.0, %v337
      %v339 = vpop.f32.mrf.mxu0
      %v340 = vadd.f32 0.0, %v339
      %341 = vmatmul.bf16.gmra.mxu0 %v268
      %v342 = vpop.f32.mrf.mxu0
      %v343 = vadd.f32 0.0, %v342
      %v344 = vpop.f32.mrf.mxu0
      %v345 = vadd.f32 0.0, %v344
      %346 = vmatmul.bf16.gmra.mxu0 %v271
      %v347 = vpop.f32.mrf.mxu0
      %v348 = vadd.f32 0.0, %v347
      %v349 = vpop.f32.mrf.mxu0
      %v350 = vadd.f32 0.0, %v349
      %351 = vmatmul.bf16.gmra.mxu0 %v274
      %v352 = vpop.f32.mrf.mxu0
      %v353 = vadd.f32 0.0, %v352
      %v354 = vpop.f32.mrf.mxu0
      %v355 = vadd.f32 0.0, %v354
      %356 = vmatmul.bf16.gmra.mxu0 %v277
      %v357 = vpop.f32.mrf.mxu0
      %v358 = vadd.f32 0.0, %v357
      %v359 = vpop.f32.mrf.mxu0
      %v360 = vadd.f32 0.0, %v359
      %361 = vmatmul.bf16.gmra.mxu0 %v280
      %v362 = vpop.f32.mrf.mxu0
      %v363 = vadd.f32 0.0, %v362
      %v364 = vpop.f32.mrf.mxu0
      %v365 = vadd.f32 0.0, %v364
      %366 = vmatmul.bf16.gmra.mxu0 %v283
      %v367 = vpop.f32.mrf.mxu0
      %v368 = vadd.f32 0.0, %v367
      %v369 = vpop.f32.mrf.mxu0
      %v370 = vadd.f32 0.0, %v369
      %371 = vmatmul.bf16.gmra.mxu0 %v286
      %v372 = vpop.f32.mrf.mxu0
      %v373 = vadd.f32 0.0, %v372
      %v374 = vpop.f32.mrf.mxu0
      %v375 = vadd.f32 0.0, %v374
      %376 = vdwg.mxu0
      %v377 = vld [vmem:[%s2] sm:$0x1]
      %v379 = vperm.slane %v377, 0
      %v381 = vadd.f32 %v298, %v379
      %v382 = vadd.f32 %v300, %v379
      %v383 = vadd.f32 %v303, %v379
      %v384 = vadd.f32 %v305, %v379
      %v385 = vadd.f32 %v308, %v379
      %v386 = vadd.f32 %v310, %v379
      %v387 = vadd.f32 %v313, %v379
      %v388 = vadd.f32 %v315, %v379
      %v389 = vadd.f32 %v318, %v379
      %v390 = vadd.f32 %v320, %v379
      %v391 = vadd.f32 %v323, %v379
      %v392 = vadd.f32 %v325, %v379
      %v393 = vadd.f32 %v328, %v379
      %v394 = vadd.f32 %v330, %v379
      %v395 = vadd.f32 %v333, %v379
      %v396 = vadd.f32 %v335, %v379
      %v397 = vadd.f32 %v338, %v379
      %v398 = vadd.f32 %v340, %v379
      %v399 = vadd.f32 %v343, %v379
      %v400 = vadd.f32 %v345, %v379
      %v401 = vadd.f32 %v348, %v379
      %v402 = vadd.f32 %v350, %v379
      %v403 = vadd.f32 %v353, %v379
      %v404 = vadd.f32 %v355, %v379
      %v405 = vadd.f32 %v358, %v379
      %v406 = vadd.f32 %v360, %v379
      %v407 = vadd.f32 %v363, %v379
      %v408 = vadd.f32 %v365, %v379
      %v409 = vadd.f32 %v368, %v379
      %v410 = vadd.f32 %v370, %v379
      %v411 = vadd.f32 %v373, %v379
      %v412 = vadd.f32 %v375, %v379
      %413 = vst.msk [vmem:[%s172] sm:$0xff] %vm239, %v381
      %414 = vst.msk [vmem:[%s172 + $0x8] sm:$0xff] %vm239, %v382
      %415 = vst.msk [vmem:[%s172 + $0x10] sm:$0xff] %vm239, %v383
      %416 = vst.msk [vmem:[%s172 + $0x18] sm:$0xff] %vm239, %v384
      %417 = vst.msk [vmem:[%s172 + $0x20] sm:$0xff] %vm239, %v385
      %418 = vst.msk [vmem:[%s172 + $0x28] sm:$0xff] %vm239, %v386
      %419 = vst.msk [vmem:[%s172 + $0x30] sm:$0xff] %vm239, %v387
      %420 = vst.msk [vmem:[%s172 + $0x38] sm:$0xff] %vm239, %v388
      %421 = vst.msk [vmem:[%s172 + $0x40] sm:$0xff] %vm239, %v389
      %422 = vst.msk [vmem:[%s172 + $0x48] sm:$0xff] %vm239, %v390
      %423 = vst.msk [vmem:[%s172 + $0x50] sm:$0xff] %vm239, %v391
      %424 = vst.msk [vmem:[%s172 + $0x58] sm:$0xff] %vm239, %v392
      %425 = vst.msk [vmem:[%s172 + $0x60] sm:$0xff] %vm239, %v393
      %426 = vst.msk [vmem:[%s172 + $0x68] sm:$0xff] %vm239, %v394
      %427 = vst.msk [vmem:[%s172 + $0x70] sm:$0xff] %vm239, %v395
      %428 = vst.msk [vmem:[%s172 + $0x78] sm:$0xff] %vm239, %v396
      %429 = vst.msk [vmem:[%s172 + $0x80] sm:$0xff] %vm239, %v397
      %430 = vst.msk [vmem:[%s172 + $0x88] sm:$0xff] %vm239, %v398
      %431 = vst.msk [vmem:[%s172 + $0x90] sm:$0xff] %vm239, %v399
      %432 = vst.msk [vmem:[%s172 + $0x98] sm:$0xff] %vm239, %v400
      %433 = vst.msk [vmem:[%s172 + $0xa0] sm:$0xff] %vm239, %v401
      %434 = vst.msk [vmem:[%s172 + $0xa8] sm:$0xff] %vm239, %v402
      %435 = vst.msk [vmem:[%s172 + $0xb0] sm:$0xff] %vm239, %v403
      %436 = vst.msk [vmem:[%s172 + $0xb8] sm:$0xff] %vm239, %v404
      %437 = vst.msk [vmem:[%s172 + $0xc0] sm:$0xff] %vm239, %v405
      %438 = vst.msk [vmem:[%s172 + $0xc8] sm:$0xff] %vm239, %v406
      %439 = vst.msk [vmem:[%s172 + $0xd0] sm:$0xff] %vm239, %v407
      %440 = vst.msk [vmem:[%s172 + $0xd8] sm:$0xff] %vm239, %v408
      %441 = vst.msk [vmem:[%s172 + $0xe0] sm:$0xff] %vm239, %v409
      %442 = vst.msk [vmem:[%s172 + $0xe8] sm:$0xff] %vm239, %v410
      %443 = vst.msk [vmem:[%s172 + $0xf0] sm:$0xff] %vm239, %v411
      %444 = vst.msk [vmem:[%s172 + $0xf8] sm:$0xff] %vm239, %v412
      %s445 = smul.u32 32, %s14
      %p446 = scmp.lt.s32.totalorder %s445, 127
      %s447 = scalar_select %p446, %s445, 127
      %s448 = smul.addr %s447, 8
      %s449 = scalar_lea.vmem %s3, %s448
      // Predicated region
      $region33: #{tpu_custom_call.1} parent=31 // pred_check
        %p450 = pneg %p100
      $region34: #{tpu_custom_call.1} parent=31 // pred_check_branch
        %452 = sbr.rel (%p450) target = $region36
      $region35: #{tpu_custom_call.1} parent=31 // pred_region
        %s453 = smul.u32 32, %s14
      $region36: #{tpu_custom_call.1} parent=31 // pred_fallthru
        _
    $region32: #{tpu_custom_call.1} parent=5 // pred_fallthru
      _
    %p454 = scmp.le.s32.totalorder 2, %s9
    // Predicated region
    $region37: #{tpu_custom_call.1} parent=5 // pred_check
      %p455 = pneg %p454
    $region38: #{tpu_custom_call.1} parent=5 // pred_check_branch
      %457 = sbr.rel (%p455) target = $region40
    $region39: #{tpu_custom_call.1} parent=5 // pred_region
      %s458 = ssub.s32 %s9, 2
      // Predicated region
      $region41: #{tpu_custom_call.1} parent=39 // pred_check
        %p459 = pneg %p106
      $region42: #{tpu_custom_call.1} parent=39 // pred_check_branch
        %461 = sbr.rel (%p459) target = $region44
      $region43: #{tpu_custom_call.1} parent=39 // pred_region
        %s462 = smul.u32 32, %s15
        %p463 = scmp.lt.s32.totalorder %s462, 127
        %s464 = scalar_select %p463, %s462, 127
        %s465 = smul.addr %s464, 8
        %s466 = scalar_lea.vmem %s3, %s465
      $region44: #{tpu_custom_call.1} parent=39 // pred_fallthru
        _
    $region40: #{tpu_custom_call.1} parent=5 // pred_fallthru
      _
  $region6: #{tpu_custom_call.1} parent=0 // loop_footer
    %s13 = sadd.s32 1, %s9
  $region7: #{tpu_custom_call.1} parent=0 // loop_footer_branch
    %8 = sbr.rel target = $region3
  $region8: #{tpu_custom_call.1} parent=0 // loop_exit
    _

</llo_original>
